<compile_context>
chip_gen: v6e
topology: v6e:2x2x1
jax: 0.10.0
libtpu: 0.0.40
codegen_flags: <defaults>
</compile_context>

<pallas_src>
import jax
import jax.numpy as jnp
from jax.experimental import pallas as pl
from jax.experimental.pallas import tpu as pltpu


def _cdiv(a: int, b: int) -> int:
    return -(-a // b)


def _round_up(a: int, m: int) -> int:
    return _cdiv(a, m) * m


def _temporal_sub_kernel(x_ref, o_ref):
    # x_ref: (nb, T, HW_blk) input dtype; o_ref: (nb, T-1, HW_blk) float32.
    t_out = o_ref.shape[1]
    hi = x_ref[:, pl.ds(1, t_out), :]
    lo = x_ref[:, pl.ds(0, t_out), :]
    o_ref[...] = (hi - lo).astype(o_ref.dtype)


def temporal_sub_block(x: jax.Array) -> jax.Array:
    """Pallas TPU implementation of TemporalSubBlock.forward.

    x: (B, C, T, H, W) array.
    returns y: (B, C, T-1, H, W) float32 (reference allocates y via torch.zeros,
    i.e. float32), with y[:, :, i] = x[:, :, i+1] - x[:, :, i].
    """
    b, c, t, h, w = x.shape
    assert t >= 2, "need at least two temporal frames"

    n = b * c
    hw = h * w
    t_out = t - 1
    out_dtype = jnp.float32  # matches torch.zeros default dtype in the reference

    # Lane-dense, layout-preserving view (N, T, H*W).
    x_flat = x.reshape(n, t, hw)

    in_itemsize = jnp.dtype(x.dtype).itemsize
    out_itemsize = jnp.dtype(out_dtype).itemsize

    # VMEM buffers are padded to the native (sublane, lane) tile:
    # f32 -> (8,128), bf16 -> (16,128), int8/fp8 -> (32,128).
    in_sub = 8 * max(1, 4 // in_itemsize)
    out_sub = 8 * max(1, 4 // out_itemsize)
    hw_pad = _round_up(hw, 128)
    t_pad_in = _round_up(t, in_sub)
    t_pad_out = _round_up(t_out, out_sub)

    per_n_in = t_pad_in * hw_pad * in_itemsize
    per_n_out = t_pad_out * hw_pad * out_itemsize
    per_n_bytes = per_n_in + per_n_out

    # Generation-aware VMEM budget (128 MiB on v5e/v6e, 64 MiB per TC on v7x).
    try:
        vmem_cap = int(pltpu.get_tpu_info().vmem_capacity_bytes)
    except Exception:  # pragma: no cover - conservative fallback (v7x per-TC)
        vmem_cap = 64 * 1024 * 1024
    # Pipeline footprint ~ 2x(in+out) double-buffer + ~1.5x block of temps,
    # so keep one combined (in+out) block to ~vmem_cap/7 (~18 MiB on 128 MiB
    # parts, ~9 MiB on v7x).
    target_combined = max(2 * 1024 * 1024, vmem_cap // 7)

    if per_n_bytes <= target_combined:
        # Tile only over N; HW stays full-width -> lane-dense unmasked stores.
        nb = max(1, target_combined // per_n_bytes)
        if n >= 2:
            nb = min(nb, _cdiv(n, 2))  # >=2 grid steps: both v7x TCs + overlap
        nb = min(nb, n)
        hw_blk = hw
    else:
        # A single-n slab exceeds the budget: also tile the lane (HW) axis
        # in multiples of 128 so stores stay lane-dense.
        nb = 1
        per_col = t_pad_in * in_itemsize + t_pad_out * out_itemsize
        hw_blk = max(128, (target_combined // per_col) // 128 * 128)
        if hw_blk >= hw:
            hw_blk = hw
        # TODO(synk): enormous T (where even (1, T, 128) overflows VMEM) would
        # need halo-tiling along T; not implemented.

    grid = (_cdiv(n, nb), _cdiv(hw, hw_blk))

    in_spec = pl.BlockSpec((nb, t, hw_blk), lambda i, j: (i, 0, j))
    out_spec = pl.BlockSpec((nb, t_out, hw_blk), lambda i, j: (i, 0, j))

    # Derive vmem_limit from the actual (padded) footprint:
    # 2x double-buffered in + 2x double-buffered out + in-kernel temporaries.
    hw_blk_pad = _round_up(min(hw_blk, hw), 128)
    blk_in = nb * t_pad_in * hw_blk_pad * in_itemsize
    blk_out = nb * t_pad_out * hw_blk_pad * out_itemsize
    temps = 2 * blk_in + blk_out
    footprint = 2 * (blk_in + blk_out) + temps + (2 << 20)
    vmem_limit = int(min(max(footprint, 32 << 20), int(0.9 * vmem_cap)))

    cost = pl.CostEstimate(
        flops=n * t_out * hw,
        transcendentals=0,
        bytes_accessed=n * t * hw * in_itemsize + n * t_out * hw * out_itemsize,
    )

    y_flat = pl.pallas_call(
        _temporal_sub_kernel,
        out_shape=jax.ShapeDtypeStruct((n, t_out, hw), out_dtype),
        grid=grid,
        in_specs=[in_spec],
        out_specs=out_spec,
        compiler_params=pltpu.CompilerParams(
            dimension_semantics=("parallel", "parallel"),
            vmem_limit_bytes=vmem_limit,
        ),
        cost_estimate=cost,
    )(x_flat)

    return y_flat.reshape(b, c, t_out, h, w)


if __name__ == "__main__":
    key = jax.random.PRNGKey(0)
    # Small shapes: batch=2, channels=4, temporal=8, spatial=16x16
    B, C, T, H, W = 2, 4, 8, 16, 16
    x = jax.random.normal(key, (B, C, T, H, W), dtype=jnp.float32)

    y = jax.block_until_ready(temporal_sub_block(x))

    # Pure-JAX reference check.
    y_ref = x[:, :, 1:, :, :] - x[:, :, :-1, :, :]
    assert y.shape == (B, C, T - 1, H, W)
    assert y.dtype == jnp.float32
    assert jnp.allclose(y, y_ref, atol=1e-6, rtol=1e-6)

    # bf16 input path: diff computed in bf16 (like PyTorch), stored into f32.
    xb = x.astype(jnp.bfloat16)
    yb = jax.block_until_ready(temporal_sub_block(xb))
    yb_ref = (xb[:, :, 1:] - xb[:, :, :-1]).astype(jnp.float32)
    assert yb.dtype == jnp.float32
    assert jnp.allclose(yb, yb_ref, atol=1e-2, rtol=1e-2)

    print("KERNEL_OK")
</pallas_src>

<mosaic_0001>
module attributes {stable_mosaic.version = 11 : i64} {
  func.func @_temporal_sub_kernel(%arg0: i32, %arg1: i32, %arg2: memref<4x8x256xf32, #tpu.memory_space<vmem>>, %arg3: memref<4x7x256xf32, #tpu.memory_space<vmem>>) attributes {dimension_semantics = [#tpu.dimension_semantics<parallel>, #tpu.dimension_semantics<parallel>], iteration_bounds = array<i64: 2, 1>, scalar_prefetch = 0 : i64, scratch_operands = 0 : i64, tpu.core_type = #tpu.core_type<tc>, window_params = [{transform_indices = @transform_0, window_bounds = array<i64: 4, 8, 256>}, {transform_indices = @transform_1, window_bounds = array<i64: 4, 7, 256>}]} {
    %c0 = arith.constant 0 : index
    %c1 = arith.constant 1 : index
    %c0_0 = arith.constant 0 : index
    %0 = vector.load %arg2[%c0, %c1, %c0_0] : memref<4x8x256xf32, #tpu.memory_space<vmem>>, vector<4x7x256xf32>
    %c0_1 = arith.constant 0 : index
    %c0_2 = arith.constant 0 : index
    %c0_3 = arith.constant 0 : index
    %1 = vector.load %arg2[%c0_1, %c0_2, %c0_3] : memref<4x8x256xf32, #tpu.memory_space<vmem>>, vector<4x7x256xf32>
    %2 = arith.subf %0, %1 : vector<4x7x256xf32>
    %c0_4 = arith.constant 0 : index
    %c0_5 = arith.constant 0 : index
    %c0_6 = arith.constant 0 : index
    %3 = vector.load %arg3[%c0_4, %c0_5, %c0_6] : memref<4x7x256xf32, #tpu.memory_space<vmem>>, vector<4x7x256xf32>
    tpu.vector_store %arg3[%c0_4, %c0_5, %c0_6], %2 {strides = array<i32>} : memref<4x7x256xf32, #tpu.memory_space<vmem>>, vector<4x7x256xf32>,
    return
  }
  func.func @transform_0(%arg0: i32, %arg1: i32) -> (i32, i32, i32) {
    %c0_i32 = arith.constant 0 : i32
    %c0_i32_0 = arith.constant 0 : i32
    return %arg0, %c0_i32, %arg1 : i32, i32, i32
  }
  func.func @transform_1(%arg0: i32, %arg1: i32) -> (i32, i32, i32) {
    %c0_i32 = arith.constant 0 : i32
    %c0_i32_0 = arith.constant 0 : i32
    return %arg0, %c0_i32, %arg1 : i32, i32, i32
  }
}

</mosaic_0001>

<llo_original>
// kernel: tpu_custom_call.1
$region0: #{tpu_custom_call.1}
  #allocation0 [shape = 'u32[]', space=smem, size = 0x4, offset = 0x4, fixed_abs, tag = 'smem constant byte address 0x4 - core index']
  #allocation1 [shape = 'u32[144,128]{1,0:T(1,128)}', space=vmem, size = 0x12000, scoped, tag = 'internal scratch']
  %s0 = inlined_call_operand.hbm [shape: f32[8,8,256], index: 0, kind: input, shape index: {}]
  %s1 = inlined_call_operand.vmem [shape: f32[8,7,256], index: 1, kind: output, shape index: {}]
  %s2 = sld [smem:[#allocation0]]
  $region41: #{tpu_custom_call.1} parent=0
    _
  %s4 = ssub.s32 1, %s2
  %s5 = scalar_select 0, %s4, %s2
  $region1: #{tpu_custom_call.1} parent=0
    #allocation2 [shape = 'u8[65536]{0}', space=vmem, size = 0x10000, scoped, tag = 'input window, operand 0']
    #allocation3 [shape = 's32[2]{0}', space=sflag, size = 0x8, scoped, tag = 'scoped memory for tpu_custom_call.1']
    %6 = vsyncpa [#allocation3], 0
    %s7 = scalar_lea.sflag [#allocation3], 1
    %8 = vsyncpa %s7, 0
    loop: start=0, step=1, limit=4
    $region2: #{tpu_custom_call.1} parent=1 // loop_pre_header
      _
    $region3: #{tpu_custom_call.1} parent=1 // loop_header
      %s10 = sphi 0, %s14
      %p11 = scmp.ge.s32.totalorder %s10, 4
      %s17 = sphi 0, %s29
      %s18 = sphi 0, %s25
      %s19 = sphi 0, %s17
      %s20 = sphi 0, %s18
      %s21 = sphi 0, %s19
      %s22 = sphi 0, %s20
      %s34 = sphi 0, %s36
      %s37 = sphi 0, %s34
      %s38 = sphi 0, %s37
      %s54 = sphi 0, %s38
      %s62 = sphi 0, %s64
      %s65 = sphi 0, %s62
      %s66 = sphi 0, %s65
      %s82 = sphi 0, %s66
    $region4: #{tpu_custom_call.1} parent=1 // loop_header_branch
      %13 = sbr.rel (%p11) target = $region8
    $region5: #{tpu_custom_call.1} parent=1 // loop_body
      %s15 = ssub.s32 %s10, 1
      %s16 = ssub.s32 %s10, 2
      %s23 = sadd.s32 1, %s18
      %p24 = scmp.ge.s32.totalorder %s23, 1
      %s25 = scalar_select %p24, 0, %s23
      %s26 = sadd.s32 1, %s17
      %s27 = scalar_select %p24, %s26, %s17
      %p28 = scmp.ge.s32.totalorder %s27, 2
      %s29 = scalar_select %p28, 0, %s27
      %s30 = ssub.s32 %s17, %s29
      %s31 = ssub.s32 %s18, %s25
      %s32 = sor.u32 %s30, %s31
      %p33 = scmp.eq.s32.totalorder %s32, 0
      %s35 = sadd.s32 %s34, 1
      %s36 = scalar_select %p33, %s34, %s35
      %p39 = pneg %p33
      %p40 = scmp.eq.s32.totalorder %s10, 1
      %p41 = por %p39, %p40
      %p42 = scmp.ne.s32.totalorder %s34, %s37
      %p43 = scmp.eq.s32.totalorder %s10, 0
      %p44 = por %p42, %p43
      %p45 = scmp.ne.s32.totalorder %s34, %s37
      %p46 = scmp.eq.s32.totalorder %s15, 1
      %p47 = por %p45, %p46
      %p48 = scmp.ne.s32.totalorder %s37, %s38
      %p49 = scmp.eq.s32.totalorder %s15, 0
      %p50 = por %p48, %p49
      %p51 = scmp.ne.s32.totalorder %s37, %s38
      %p52 = scmp.eq.s32.totalorder %s16, 1
      %p53 = por %p51, %p52
      %p55 = scmp.ne.s32.totalorder %s38, %s54
      %p56 = scmp.eq.s32.totalorder %s16, 0
      %p57 = por %p55, %p56
      %s58 = ssub.s32 %s17, %s29
      %s59 = ssub.s32 %s18, %s25
      %s60 = sor.u32 %s58, %s59
      %p61 = scmp.eq.s32.totalorder %s60, 0
      %s63 = sadd.s32 %s62, 1
      %s64 = scalar_select %p61, %s62, %s63
      %p67 = pneg %p61
      %p68 = scmp.eq.s32.totalorder %s10, 1
      %p69 = por %p67, %p68
      %p70 = scmp.ne.s32.totalorder %s62, %s65
      %p71 = scmp.eq.s32.totalorder %s10, 0
      %p72 = por %p70, %p71
      %p73 = scmp.ne.s32.totalorder %s62, %s65
      %p74 = scmp.eq.s32.totalorder %s15, 1
      %p75 = por %p73, %p74
      %p76 = scmp.ne.s32.totalorder %s65, %s66
      %p77 = scmp.eq.s32.totalorder %s15, 0
      %p78 = por %p76, %p77
      %p79 = scmp.ne.s32.totalorder %s65, %s66
      %p80 = scmp.eq.s32.totalorder %s16, 1
      %p81 = por %p79, %p80
      %p83 = scmp.ne.s32.totalorder %s66, %s82
      %p84 = scmp.eq.s32.totalorder %s16, 0
      %p85 = por %p83, %p84
      %p86 = scmp.le.s32.totalorder 1, %s10
      %p87 = scmp.lt.s32.totalorder %s10, 3
      %p88 = pnand %p86, %p87
      %p89 = pneg %p88
      // Predicated region
      $region9: #{tpu_custom_call.1} parent=5 // pred_check
        _
      $region10: #{tpu_custom_call.1} parent=5 // pred_check_branch
        %91 = sbr.rel (%p88) target = $region12
      $region11: #{tpu_custom_call.1} parent=5 // pred_region
        %s92 = ssub.s32 %s10, 1
      $region12: #{tpu_custom_call.1} parent=5 // pred_fallthru
        _
      %p93 = scmp.lt.s32.totalorder %s10, 2
      // Predicated region
      $region13: #{tpu_custom_call.1} parent=5 // pred_check
        %p94 = pneg %p93
      $region14: #{tpu_custom_call.1} parent=5 // pred_check_branch
        %96 = sbr.rel (%p94) target = $region16
      $region15: #{tpu_custom_call.1} parent=5 // pred_region
        // Predicated region
        $region17: #{tpu_custom_call.1} parent=15 // pred_check
          %p97 = pneg %p44
        $region18: #{tpu_custom_call.1} parent=15 // pred_check_branch
          %99 = sbr.rel (%p97) target = $region20
        $region19: #{tpu_custom_call.1} parent=15 // pred_region
          %s100 = sand.u32 %s34, 1
          %s101 = scalar_lea.sflag [#allocation3], %s100
          %s102 = sand.u32 %s34, 1
          %s103 = smul.addr %s102, 64
          %s104 = scalar_lea.vmem [#allocation2], %s103
          %s105 = smul.u32 4, %s17
          %s106 = smul.u32 2, %s18
          %s108 = ssub.s32 1024, 1024
          %109 = vsyncadd %s101, %s108
          %s110 = smul.addr %s105, 2
          %s111 = sadd.s32 %s106, %s110
          %s112 = smul.addr %s111, 128
          %s113 = scalar_lea.hbm %s0, %s112
          %s114 = sshll.u32 %s104, 4
          %s115 = int_to_ptr.vmem [resolvable:$true] %s114
          %120 = dma.hbm_to_vmem [thread:$0]  %s113, 1024, %s115, %s101, 256, 256, 16
        $region20: #{tpu_custom_call.1} parent=15 // pred_fallthru
          _
      $region16: #{tpu_custom_call.1} parent=5 // pred_fallthru
        _
      %p121 = scmp.le.s32.totalorder 1, %s10
      %p122 = scmp.lt.s32.totalorder %s10, 3
      %p123 = pnand %p121, %p122
      %p124 = pneg %p123
      // Predicated region
      $region21: #{tpu_custom_call.1} parent=5 // pred_check
        _
      $region22: #{tpu_custom_call.1} parent=5 // pred_check_branch
        %126 = sbr.rel (%p123) target = $region24
      $region23: #{tpu_custom_call.1} parent=5 // pred_region
        %s127 = ssub.s32 %s10, 1
        %s128 = sand.u32 %s37, 1
        %s129 = scalar_lea.sflag [#allocation3], %s128
        %s130 = sand.u32 %s37, 1
        %s131 = smul.addr %s130, 64
        %s132 = scalar_lea.vmem [#allocation2], %s131
        // Predicated region
        $region25: #{tpu_custom_call.1} parent=23 // pred_check
          %p133 = pneg %p50
        $region26: #{tpu_custom_call.1} parent=23 // pred_check_branch
          %135 = sbr.rel (%p133) target = $region28
        $region27: #{tpu_custom_call.1} parent=23 // pred_region
          %136 = dma.done %s129, 1024
        $region28: #{tpu_custom_call.1} parent=23 // pred_fallthru
          _
        %s137 = sand.u32 %s37, 1
        %s138 = scalar_lea.sflag [#allocation3], %s137
        %s139 = sand.u32 %s37, 1
        %s140 = smul.addr %s139, 64
        %s141 = scalar_lea.vmem [#allocation2], %s140
        %p142 = pneg %p50
        %p143 = pneg %p47
        %p144 = pneg %p78
        %p145 = pneg %p75
        %s146 = smul.u32 4, %s19
        %s147 = smul.u32 2, %s20
        %p148 = scmp.lt.s32.totalorder %s146, 7
        %s149 = scalar_select %p148, %s146, 7
        %p150 = scmp.lt.s32.totalorder %s147, 1
        %s151 = scalar_select %p150, %s147, 1
        %s152 = smul.addr %s149, 2
        %s153 = sadd.s32 %s151, %s152
        %s154 = smul.addr %s153, 8
        %s155 = scalar_lea.vmem %s1, %s154
        %s156 = smul.u32 4, %s19
        %s157 = smul.u32 2, %s20
        %s158 = smul.u32 4, %s19
        %s159 = smul.u32 2, %s20
        %p160 = scmp.lt.s32.totalorder %s158, 7
        %s161 = scalar_select %p160, %s158, 7
        %p162 = scmp.lt.s32.totalorder %s159, 1
        %s163 = scalar_select %p162, %s159, 1
        %s164 = smul.addr %s161, 2
        %s165 = sadd.s32 %s163, %s164
        %s166 = smul.addr %s165, 8
        %s167 = scalar_lea.vmem %s1, %s166
        %s168 = smul.u32 4, %s19
        %s169 = smul.u32 2, %s20
        %v170 = vld [vmem:[%s132] sm:$0xfe]
        %v171 = vld [vmem:[%s132 + $0x8] sm:$0xfe]
        %v172 = vld [vmem:[%s132 + $0x10] sm:$0xfe]
        %v173 = vld [vmem:[%s132 + $0x18] sm:$0xfe]
        %v174 = vld [vmem:[%s132 + $0x20] sm:$0xfe]
        %v175 = vld [vmem:[%s132 + $0x28] sm:$0xfe]
        %v176 = vld [vmem:[%s132 + $0x30] sm:$0xfe]
        %v177 = vld [vmem:[%s132 + $0x38] sm:$0xfe]
        %v178 = vld [vmem:[%s132] sm:$0x7f]
        %v179 = vld [vmem:[%s132 + $0x8] sm:$0x7f]
        %v180 = vld [vmem:[%s132 + $0x10] sm:$0x7f]
        %v181 = vld [vmem:[%s132 + $0x18] sm:$0x7f]
        %v182 = vld [vmem:[%s132 + $0x20] sm:$0x7f]
        %v183 = vld [vmem:[%s132 + $0x28] sm:$0x7f]
        %v184 = vld [vmem:[%s132 + $0x30] sm:$0x7f]
        %v185 = vld [vmem:[%s132 + $0x38] sm:$0x7f]
        %v194 = vrot.slane %v178, 7
        %v195 = vrot.slane %v179, 7
        %v196 = vrot.slane %v180, 7
        %v197 = vrot.slane %v181, 7
        %v198 = vrot.slane %v182, 7
        %v199 = vrot.slane %v183, 7
        %v200 = vrot.slane %v184, 7
        %v201 = vrot.slane %v185, 7
        %v210 = vsub.f32 %v170, %v194
        %v211 = vsub.f32 %v171, %v195
        %v212 = vsub.f32 %v172, %v196
        %v213 = vsub.f32 %v173, %v197
        %v214 = vsub.f32 %v174, %v198
        %v215 = vsub.f32 %v175, %v199
        %v216 = vsub.f32 %v176, %v200
        %v217 = vsub.f32 %v177, %v201
        %v226 = vrot.slane %v210, 1
        %v227 = vrot.slane %v211, 1
        %v228 = vrot.slane %v212, 1
        %v229 = vrot.slane %v213, 1
        %v230 = vrot.slane %v214, 1
        %v231 = vrot.slane %v215, 1
        %v232 = vrot.slane %v216, 1
        %v233 = vrot.slane %v217, 1
        %242 = vst [vmem:[%s167] sm:$0x7f] %v226
        %243 = vst [vmem:[%s167 + $0x8] sm:$0x7f] %v227
        %244 = vst [vmem:[%s167 + $0x10] sm:$0x7f] %v228
        %245 = vst [vmem:[%s167 + $0x18] sm:$0x7f] %v229
        %246 = vst [vmem:[%s167 + $0x20] sm:$0x7f] %v230
        %247 = vst [vmem:[%s167 + $0x28] sm:$0x7f] %v231
        %248 = vst [vmem:[%s167 + $0x30] sm:$0x7f] %v232
        %249 = vst [vmem:[%s167 + $0x38] sm:$0x7f] %v233
        %s250 = smul.u32 4, %s19
        %s251 = smul.u32 2, %s20
        %p252 = scmp.lt.s32.totalorder %s250, 7
        %s253 = scalar_select %p252, %s250, 7
        %p254 = scmp.lt.s32.totalorder %s251, 1
        %s255 = scalar_select %p254, %s251, 1
        %s256 = smul.addr %s253, 2
        %s257 = sadd.s32 %s255, %s256
        %s258 = smul.addr %s257, 8
        %s259 = scalar_lea.vmem %s1, %s258
        // Predicated region
        $region29: #{tpu_custom_call.1} parent=23 // pred_check
          %p260 = pneg %p75
        $region30: #{tpu_custom_call.1} parent=23 // pred_check_branch
          %262 = sbr.rel (%p260) target = $region32
        $region31: #{tpu_custom_call.1} parent=23 // pred_region
          %s263 = smul.u32 4, %s19
          %s264 = smul.u32 2, %s20
        $region32: #{tpu_custom_call.1} parent=23 // pred_fallthru
          _
      $region24: #{tpu_custom_call.1} parent=5 // pred_fallthru
        _
      %p265 = scmp.le.s32.totalorder 2, %s10
      // Predicated region
      $region33: #{tpu_custom_call.1} parent=5 // pred_check
        %p266 = pneg %p265
      $region34: #{tpu_custom_call.1} parent=5 // pred_check_branch
        %268 = sbr.rel (%p266) target = $region36
      $region35: #{tpu_custom_call.1} parent=5 // pred_region
        %s269 = ssub.s32 %s10, 2
        // Predicated region
        $region37: #{tpu_custom_call.1} parent=35 // pred_check
          %p270 = pneg %p81
        $region38: #{tpu_custom_call.1} parent=35 // pred_check_branch
          %272 = sbr.rel (%p270) target = $region40
        $region39: #{tpu_custom_call.1} parent=35 // pred_region
          %s273 = smul.u32 4, %s21
          %s274 = smul.u32 2, %s22
          %p275 = scmp.lt.s32.totalorder %s273, 7
          %s276 = scalar_select %p275, %s273, 7
          %p277 = scmp.lt.s32.totalorder %s274, 1
          %s278 = scalar_select %p277, %s274, 1
          %s279 = smul.addr %s276, 2
          %s280 = sadd.s32 %s278, %s279
          %s281 = smul.addr %s280, 8
          %s282 = scalar_lea.vmem %s1, %s281
        $region40: #{tpu_custom_call.1} parent=35 // pred_fallthru
          _
      $region36: #{tpu_custom_call.1} parent=5 // pred_fallthru
        _
    $region6: #{tpu_custom_call.1} parent=1 // loop_footer
      %s14 = sadd.s32 1, %s10
    $region7: #{tpu_custom_call.1} parent=1 // loop_footer_branch
      %9 = sbr.rel target = $region3
    $region8: #{tpu_custom_call.1} parent=1 // loop_exit
      _
    %283 = vsyncpa [#allocation3], 1
    %s284 = scalar_lea.sflag [#allocation3], 1
    %285 = vsyncpa %s284, 1

</llo_original>
